<compile_context>
chip_gen: v7x
topology: tpu7x:2x2x1
jax: 0.10.0
libtpu: 0.0.40
codegen_flags: <defaults>
</compile_context>

<pallas_src>
import functools

import jax
import jax.numpy as jnp
from jax import lax
from jax.experimental import pallas as pl
from jax.experimental.pallas import tpu as pltpu


# ------------------------------ device helpers ------------------------------- #

def _device_kind():
    try:
        return jax.devices()[0].device_kind.lower()
    except Exception:
        return ""


def default_matmul_dtype():
    """MXU matmul-operand dtype. The MXU is natively bf16 on v5e/v6e/v7x; the
    cast happens once in the wrapper (one XLA op), not per timestep."""
    return jnp.bfloat16


def default_act_dtype():
    """Gate-nonlinearity dtype: bf16 EUP path on v6e/v7x (~2x transcendental
    throughput); f32 on v5e (no bf16 VPU/EUP)."""
    kind = _device_kind()
    if "v6" in kind or "v7" in kind:
        return jnp.bfloat16
    return jnp.float32


def _vmem_capacity():
    try:
        return int(pltpu.get_tpu_info().vmem_capacity_bytes)
    except Exception:
        return 64 * 1024 * 1024            # conservative fallback (v7x per-TC VMEM)


def _vmem_limit(*block_bytes):
    """Scoped-VMEM limit sized from the actual block footprint (the default
    16/32 MiB scoped limit is far below physical at production shapes)."""
    cap = _vmem_capacity()
    need = int(sum(block_bytes)) + (8 << 20)   # headroom for compiler scratch
    limit = max(32 << 20, need)
    if cap >= (48 << 20):
        limit = min(limit, int(0.9 * cap))
    return limit


# -------------------- single-buffered constant-weight specs ------------------ #

_SINGLE_BUFFER_MODE = "unprobed"


def _single_buffer_mode():
    """pl.Buffered(1) pipeline mode for constant-index blocks if this Pallas
    build supports it (probed once on a tiny kernel), else None (default
    double-buffering)."""
    global _SINGLE_BUFFER_MODE
    if _SINGLE_BUFFER_MODE != "unprobed":
        return _SINGLE_BUFFER_MODE
    mode = None
    try:
        buffered_once = pl.Buffered(1)

        def _probe(x_ref, o_ref):
            o_ref[...] = x_ref[...] + 1.0

        out = pl.pallas_call(
            _probe,
            out_shape=jax.ShapeDtypeStruct((8, 128), jnp.float32),
            grid=(2,),
            in_specs=[pl.BlockSpec((8, 128), lambda i: (0, 0),
                                   pipeline_mode=buffered_once)],
            out_specs=pl.BlockSpec((8, 128), lambda i: (0, 0)),
        )(jnp.zeros((8, 128), jnp.float32))
        if bool(jnp.allclose(jax.block_until_ready(out), 1.0)):
            mode = buffered_once
    except Exception:
        mode = None
    _SINGLE_BUFFER_MODE = mode
    return mode


def _const_spec(block_shape, index_map=None):
    """BlockSpec for a block whose index never changes across the grid;
    single-buffered when supported (halves its VMEM footprint)."""
    if index_map is None:
        index_map = lambda *_: (0,) * len(block_shape)
    mode = _single_buffer_mode()
    if mode is None:
        return pl.BlockSpec(block_shape, index_map)
    return pl.BlockSpec(block_shape, index_map, pipeline_mode=mode)


# ------------------------------ tiling pickers -------------------------------- #

def _pick_batch_block(B):
    """Split batch across the grid's 'parallel' axis (2 TensorCores on v7x)
    whenever the halves stay >= 8 sublanes."""
    if B % 2 == 0 and (B // 2) % 8 == 0:
        return B // 2
    return B


def _pick_time_chunk(T, H, Bb, *, gx_itemsize, out_itemsize, vmem_budget,
                     pref=128):
    """Largest time chunk (divisor of T, <= pref) whose double-buffered gx/out
    blocks fit the VMEM budget. Tc is the leading (untiled) block dim so it has
    no (8,128) alignment constraint."""
    def footprint(tc):
        return (2 * tc * Bb * (4 * H) * gx_itemsize
                + 2 * tc * Bb * H * out_itemsize)
    best = 1
    for tc in range(1, min(T, pref) + 1):
        if T % tc == 0 and footprint(tc) <= vmem_budget:
            best = tc
    return best


def _pick_m_block(m, pref=512):
    """Projection row block: the full (B*T) axis when small, else 512 rows
    (8x/128x aligned); a non-dividing tail becomes a masked partial block."""
    return m if m <= pref else pref


def _pick_n_block(h4, bm, d, in_item, out_item, budget):
    """Tile the 4H column dim of the projection when weight+output blocks would
    overflow the VMEM budget (the v7x 64 MiB mitigation)."""
    bn = h4
    if h4 % 128 != 0:
        return bn                                  # tiny 4H: keep the full dim
    def fp(n):
        return 2 * (bm * d + d * n) * in_item + 2 * bm * n * out_item
    while bn > 512 and fp(bn) > budget and bn % 2 == 0 and (bn // 2) % 128 == 0:
        bn //= 2
    return bn


def _reorder_gate_columns(w_t, H):
    """PyTorch gate order [i, f, g, o] -> [i, f, o, g]: the three sigmoid gates
    become contiguous (one wide sigmoid over 3H, one tanh over H)."""
    i, f, g, o = (w_t[..., k * H:(k + 1) * H] for k in range(4))
    return jnp.concatenate([i, f, o, g], axis=-1)


# ------------------------------ Pallas kernels -------------------------------- #

def _proj_kernel(x_ref, w_ref, b_ref, o_ref):
    """Hoisted input projection: (bm, D) @ (D, bn) + bias -> (bm, bn), f32 acc."""
    o_ref[...] = (jnp.dot(x_ref[...], w_ref[...],
                          preferred_element_type=jnp.float32)
                  + b_ref[...]).astype(o_ref.dtype)


def _lstm_cell(gx_t, h, c, whh_ref, H, act_dtype):
    """One LSTM step. Gate column order is [i, f, o | g]; state (h, c) stays in
    f32; the MXU sees matmul-dtype operands; the EUP sees act_dtype."""
    gates = gx_t.astype(jnp.float32) + jnp.dot(
        h.astype(whh_ref.dtype), whh_ref[...],
        preferred_element_type=jnp.float32)
    ga = gates.astype(act_dtype)
    sig = jax.nn.sigmoid(ga[:, :3 * H]).astype(jnp.float32)   # [i | f | o]
    g_t = jnp.tanh(ga[:, 3 * H:]).astype(jnp.float32)         # g
    c_new = sig[:, H:2 * H] * c + sig[:, :H] * g_t
    h_new = (sig[:, 2 * H:3 * H]
             * jnp.tanh(c_new.astype(act_dtype)).astype(jnp.float32))
    return h_new, c_new


def _lstm_rec_seq_kernel(gx_ref, whh_ref, out_ref, h_ref, c_ref, *,
                         hidden, act_dtype, unroll):
    """Recurrence over one (batch block, time chunk); per-step stores of h into
    the time-major slab.  h/c carry across time chunks in VMEM scratch."""
    @pl.when(pl.program_id(1) == 0)
    def _():
        h_ref[...] = jnp.zeros_like(h_ref)
        c_ref[...] = jnp.zeros_like(c_ref)

    H = hidden
    Tc = gx_ref.shape[0]

    def step(t, carry):
        h, c = carry
        h, c = _lstm_cell(gx_ref[t], h, c, whh_ref, H, act_dtype)
        out_ref[t] = h.astype(out_ref.dtype)   # per-step store: no Tc-deep
        return h, c                            # register concat -> no spills

    h, c = lax.fori_loop(0, Tc, step, (h_ref[...], c_ref[...]), unroll=unroll)
    h_ref[...] = h
    c_ref[...] = c


def _lstm_rec_head_kernel(gx_ref, whh_ref, wout_ref, bout_ref, out_ref,
                          h_ref, c_ref, *, hidden, act_dtype, unroll):
    """Last LSTM layer with the Linear head fused in; only (B, O) leaves HBM."""
    @pl.when(pl.program_id(1) == 0)
    def _():
        h_ref[...] = jnp.zeros_like(h_ref)
        c_ref[...] = jnp.zeros_like(c_ref)

    H = hidden
    Tc = gx_ref.shape[0]

    def step(t, carry):
        h, c = carry
        return _lstm_cell(gx_ref[t], h, c, whh_ref, H, act_dtype)

    h, c = lax.fori_loop(0, Tc, step, (h_ref[...], c_ref[...]), unroll=unroll)
    h_ref[...] = h
    c_ref[...] = c

    # Fused Linear head: only on the FINAL time chunk (saves T/Tc - 1 redundant
    # MXU matmuls + writebacks; the output block is resident across 't').
    @pl.when(pl.program_id(1) == pl.num_programs(1) - 1)
    def _():
        out_ref[...] = (jnp.dot(h.astype(wout_ref.dtype), wout_ref[...],
                                preferred_element_type=jnp.float32)
                        + bout_ref[...].astype(jnp.float32)).astype(out_ref.dtype)


# --------------------------------- wrappers ----------------------------------- #

def input_projection(x_flat, w_ih_t, bias, *, matmul_dtype, out_dtype):
    """x_flat: (T*B, D_in) time-major -> gates_x (T*B, 4H), one big MXU matmul."""
    M, D = x_flat.shape
    H4 = w_ih_t.shape[1]
    in_item = jnp.dtype(matmul_dtype).itemsize
    out_item = jnp.dtype(out_dtype).itemsize
    cap = _vmem_capacity()

    bm = _pick_m_block(M)
    bn = _pick_n_block(H4, bm, D, in_item, out_item, budget=int(0.45 * cap))
    grid = (pl.cdiv(M, bm), pl.cdiv(H4, bn))

    if grid[1] == 1:   # weight / bias blocks are constant -> single-buffer them
        w_spec = _const_spec((D, bn), lambda i, j: (0, j))
        b_spec = _const_spec((1, bn), lambda i, j: (0, j))
    else:
        w_spec = pl.BlockSpec((D, bn), lambda i, j: (0, j))
        b_spec = pl.BlockSpec((1, bn), lambda i, j: (0, j))

    vmem_limit = _vmem_limit(2 * bm * D * in_item, 2 * D * bn * in_item,
                             2 * bm * bn * out_item, 2 * bn * 4)
    return pl.pallas_call(
        _proj_kernel,
        out_shape=jax.ShapeDtypeStruct((M, H4), out_dtype),
        grid_spec=pltpu.PrefetchScalarGridSpec(
            num_scalar_prefetch=0,
            grid=grid,
            in_specs=[pl.BlockSpec((bm, D), lambda i, j: (i, 0)),
                      w_spec, b_spec],
            out_specs=pl.BlockSpec((bm, bn), lambda i, j: (i, j)),
        ),
        compiler_params=pltpu.CompilerParams(
            dimension_semantics=("parallel", "parallel"),
            vmem_limit_bytes=vmem_limit),
    )(x_flat.astype(matmul_dtype), w_ih_t.astype(matmul_dtype),
      bias.astype(jnp.float32))


def lstm_layer_recurrence(gates_x, w_hh_t, *, batch_block, time_chunk,
                          matmul_dtype, act_dtype, out_dtype, unroll):
    """gates_x: (T, B, 4H) time-major.  Returns hidden slab (T, B, H)."""
    T, B, H4 = gates_x.shape
    H = w_hh_t.shape[0]
    Bb, Tc = batch_block, time_chunk
    assert B % Bb == 0 and T % Tc == 0

    kern = functools.partial(_lstm_rec_seq_kernel, hidden=H,
                             act_dtype=act_dtype, unroll=unroll)
    gx_item = gates_x.dtype.itemsize
    out_item = jnp.dtype(out_dtype).itemsize
    w_item = jnp.dtype(matmul_dtype).itemsize
    vmem_limit = _vmem_limit(2 * Tc * Bb * H4 * gx_item,
                             2 * Tc * Bb * H * out_item,
                             2 * H * H4 * w_item, 4 * Bb * H * 4)
    return pl.pallas_call(
        kern,
        out_shape=jax.ShapeDtypeStruct((T, B, H), out_dtype),
        grid_spec=pltpu.PrefetchScalarGridSpec(
            num_scalar_prefetch=0,
            grid=(B // Bb, T // Tc),        # (parallel batch, sequential time)
            in_specs=[
                pl.BlockSpec((Tc, Bb, H4), lambda b, t: (t, b, 0)),
                _const_spec((H, H4)),
            ],
            out_specs=pl.BlockSpec((Tc, Bb, H), lambda b, t: (t, b, 0)),
            scratch_shapes=[pltpu.VMEM((Bb, H), jnp.float32),   # h carry
                            pltpu.VMEM((Bb, H), jnp.float32)],  # c carry
        ),
        compiler_params=pltpu.CompilerParams(
            dimension_semantics=("parallel", "arbitrary"),
            vmem_limit_bytes=vmem_limit),
    )(gates_x, w_hh_t.astype(matmul_dtype))


def lstm_layer_recurrence_with_head(gates_x, w_hh_t, w_out_t, b_out, *,
                                    batch_block, time_chunk, matmul_dtype,
                                    act_dtype, unroll):
    """Last layer: recurrence + fused Linear head -> (B, O) f32."""
    T, B, H4 = gates_x.shape
    H = w_hh_t.shape[0]
    O = w_out_t.shape[1]
    Bb, Tc = batch_block, time_chunk
    assert B % Bb == 0 and T % Tc == 0

    kern = functools.partial(_lstm_rec_head_kernel, hidden=H,
                             act_dtype=act_dtype, unroll=unroll)
    gx_item = gates_x.dtype.itemsize
    w_item = jnp.dtype(matmul_dtype).itemsize
    vmem_limit = _vmem_limit(2 * Tc * Bb * H4 * gx_item,
                             2 * H * H4 * w_item, 2 * H * O * w_item,
                             2 * Bb * O * 4, 4 * Bb * H * 4)
    return pl.pallas_call(
        kern,
        out_shape=jax.ShapeDtypeStruct((B, O), jnp.float32),
        grid_spec=pltpu.PrefetchScalarGridSpec(
            num_scalar_prefetch=0,
            grid=(B // Bb, T // Tc),
            in_specs=[
                pl.BlockSpec((Tc, Bb, H4), lambda b, t: (t, b, 0)),
                _const_spec((H, H4)),
                _const_spec((H, O)),
                _const_spec((1, O)),
            ],
            out_specs=pl.BlockSpec((Bb, O), lambda b, t: (b, 0)),
            scratch_shapes=[pltpu.VMEM((Bb, H), jnp.float32),
                            pltpu.VMEM((Bb, H), jnp.float32)],
        ),
        compiler_params=pltpu.CompilerParams(
            dimension_semantics=("parallel", "arbitrary"),
            vmem_limit_bytes=vmem_limit),
    )(gates_x, w_hh_t.astype(matmul_dtype), w_out_t.astype(matmul_dtype),
      b_out.astype(jnp.float32))


def lstm_model_forward(x, params, *, compute_dtype=None, act_dtype=None,
                       time_chunk=None, batch_block=None, unroll=None):
    """Equivalent of LSTM.forward(x) with zero initial (h, c)."""
    # TODO(synk): non-zero initial (h, c) (the module's optional args) could be
    # supported by seeding the h/c VMEM carry from extra inputs at t == 0.
    # TODO(synk): at production sizes the projection could be fused into the
    # recurrence kernel to drop the gates_x HBM round trip entirely.
    matmul_dtype = default_matmul_dtype() if compute_dtype is None else compute_dtype
    exact = jnp.dtype(matmul_dtype) == jnp.dtype(jnp.float32)
    if act_dtype is None:
        act_dtype = jnp.float32 if exact else default_act_dtype()
    gx_dtype = jnp.float32 if exact else jnp.bfloat16   # gates_x / hidden-slab HBM dtype

    B, T, D_in = x.shape
    layers = params["lstm_layers"]
    H = layers[0]["w_hh_t"].shape[0]

    Bb = _pick_batch_block(B) if batch_block is None else batch_block
    assert B % Bb == 0 and (Bb == B or Bb % 8 == 0)

    cap = _vmem_capacity()
    budget = int(0.45 * cap) - 2 * H * 4 * H * jnp.dtype(matmul_dtype).itemsize
    if time_chunk is None:
        Tc = _pick_time_chunk(T, H, Bb,
                              gx_itemsize=jnp.dtype(gx_dtype).itemsize,
                              out_itemsize=jnp.dtype(gx_dtype).itemsize,
                              vmem_budget=max(budget, 1 << 20))
    else:
        Tc = time_chunk
    assert T % Tc == 0
    if unroll is None:
        unroll = min(Tc, 8)

    # Time-major layout so the recurrence uses documented dynamic first-axis
    # ref[t] loads/stores (no dynamic lane slicing); x is the smallest tensor
    # in the pipeline, so this one transpose is cheap.
    seq = jnp.transpose(x, (1, 0, 2)).reshape(T * B, D_in)

    out = None
    for li, layer in enumerate(layers):
        w_ih_t = _reorder_gate_columns(layer["w_ih_t"], H)
        w_hh_t = _reorder_gate_columns(layer["w_hh_t"], H)
        bias = _reorder_gate_columns(layer["bias"], H)
        # (1) Hoisted input projection over ALL timesteps at once.
        gx = input_projection(seq, w_ih_t, bias,
                              matmul_dtype=matmul_dtype, out_dtype=gx_dtype)
        gx = gx.reshape(T, B, 4 * H)                      # free reshape (time-major)
        if li == len(layers) - 1:
            # (2) Last layer: recurrence + pl.when-guarded fused output head.
            out = lstm_layer_recurrence_with_head(
                gx, w_hh_t, params["out_w_t"], params["out_b"],
                batch_block=Bb, time_chunk=Tc, matmul_dtype=matmul_dtype,
                act_dtype=act_dtype, unroll=unroll)
        else:
            # (3) Intermediate layer: hidden slab feeds the next projection.
            slab = lstm_layer_recurrence(
                gx, w_hh_t, batch_block=Bb, time_chunk=Tc,
                matmul_dtype=matmul_dtype, act_dtype=act_dtype,
                out_dtype=gx_dtype, unroll=unroll)
            seq = slab.reshape(T * B, H)
    return out


# --------------------------- Parameter setup ---------------------------------- #

def init_params(key, input_dim, num_hidden, num_layers, output_dim):
    params = {"lstm_layers": []}
    for layer in range(num_layers):
        d_in = input_dim if layer == 0 else num_hidden
        key, k1, k2, k3, k4 = jax.random.split(key, 5)
        scale = 1.0 / jnp.sqrt(num_hidden)
        w_ih = jax.random.uniform(k1, (4 * num_hidden, d_in), jnp.float32, -scale, scale)
        w_hh = jax.random.uniform(k2, (4 * num_hidden, num_hidden), jnp.float32, -scale, scale)
        b_ih = jax.random.uniform(k3, (4 * num_hidden,), jnp.float32, -scale, scale)
        b_hh = jax.random.uniform(k4, (4 * num_hidden,), jnp.float32, -scale, scale)
        params["lstm_layers"].append({
            "w_ih_t": w_ih.T,                  # (d_in, 4H), PyTorch order [i,f,g,o]
            "w_hh_t": w_hh.T,                  # (H, 4H)
            "bias": (b_ih + b_hh)[None, :],    # (1, 4H)
        })
    key, k5, k6 = jax.random.split(key, 3)
    scale = 1.0 / jnp.sqrt(num_hidden)
    w_out = jax.random.uniform(k5, (output_dim, num_hidden), jnp.float32, -scale, scale)
    b_out = jax.random.uniform(k6, (output_dim,), jnp.float32, -scale, scale)
    params["out_w_t"] = w_out.T                # (H, O)
    params["out_b"] = b_out[None, :]           # (1, O)
    return params


# --------------------------- Reference (pure JAX) ------------------------------ #

def reference_forward(x, params):
    out = x
    for layer in params["lstm_layers"]:
        B, T, _ = out.shape
        H = layer["w_hh_t"].shape[0]
        h = jnp.zeros((B, H), jnp.float32)
        c = jnp.zeros((B, H), jnp.float32)
        hs = []
        for t in range(T):
            gates = out[:, t, :] @ layer["w_ih_t"] + h @ layer["w_hh_t"] + layer["bias"]
            i_g = jax.nn.sigmoid(gates[:, 0 * H:1 * H])
            f_g = jax.nn.sigmoid(gates[:, 1 * H:2 * H])
            g_g = jnp.tanh(gates[:, 2 * H:3 * H])
            o_g = jax.nn.sigmoid(gates[:, 3 * H:4 * H])
            c = f_g * c + i_g * g_g
            h = o_g * jnp.tanh(c)
            hs.append(h)
        out = jnp.stack(hs, axis=1)
    return out[:, -1, :] @ params["out_w_t"] + params["out_b"]


# ---------------------------------- Main --------------------------------------- #

if __name__ == "__main__":
    batch = 2
    seq_len = 8
    input_dim = 16
    num_hidden = 32
    num_layers = 2
    output_dim = 4

    key = jax.random.PRNGKey(0)
    key, kx, kp = jax.random.split(key, 3)
    x = jax.random.normal(kx, (batch, seq_len, input_dim), jnp.float32)
    params = init_params(kp, input_dim, num_hidden, num_layers, output_dim)

    ref = reference_forward(x, params)

    # (1) Exact f32 path.  time_chunk=4 -> 2 time chunks per batch block, which
    #     exercises the h/c VMEM carry AND the pl.when-guarded fused head.
    out_f32 = jax.block_until_ready(
        lstm_model_forward(x, params, compute_dtype=jnp.float32, time_chunk=4))
    assert out_f32.shape == (batch, output_dim)
    assert jnp.allclose(out_f32, ref, rtol=1e-4, atol=5e-5), \
        "Pallas f32 output mismatch vs reference"

    # (2) Default fast path: bf16 MXU operands + bf16 gates_x / hidden slab
    #     (and bf16 EUP activations on v6e/v7x); state stays f32, so only a
    #     small relative error vs the f32 reference is expected.
    out_fast = jax.block_until_ready(
        lstm_model_forward(x, params, time_chunk=4))
    assert out_fast.shape == (batch, output_dim)
    assert jnp.allclose(out_fast, ref, rtol=1e-1, atol=1e-1), \
        "Pallas fast-path output mismatch vs reference"

    # (3) Fully-auto tiling (Tc / Bb / projection tiles derived from VMEM size).
    out_auto = jax.block_until_ready(lstm_model_forward(x, params))
    assert jnp.allclose(out_auto, ref, rtol=1e-1, atol=1e-1), \
        "Pallas auto-tiled output mismatch vs reference"

    print("KERNEL_OK")
</pallas_src>

<mosaic_0001>
module attributes {stable_mosaic.version = 11 : i64} {
  func.func @_probe(%arg0: i32, %arg1: memref<8x128xf32, #tpu.memory_space<vmem>>, %arg2: memref<8x128xf32, #tpu.memory_space<vmem>>) attributes {dimension_semantics = [#tpu.dimension_semantics<arbitrary>], iteration_bounds = array<i64: 2>, scalar_prefetch = 0 : i64, scratch_operands = 0 : i64, tpu.core_type = #tpu.core_type<tc>, window_params = [{pipeline_mode = #tpu.pipeline_mode<synchronous>, transform_indices = @transform_0, window_bounds = array<i64: 8, 128>}, {pipeline_mode = #tpu.pipeline_mode<synchronous>, transform_indices = @transform_1, window_bounds = array<i64: 8, 128>}]} {
    %c0 = arith.constant 0 : index
    %c0_0 = arith.constant 0 : index
    %0 = vector.load %arg1[%c0, %c0_0] : memref<8x128xf32, #tpu.memory_space<vmem>>, vector<8x128xf32>
    %cst = arith.constant 1.000000e+00 : f32
    %1 = vector.broadcast %cst : f32 to vector<8x128xf32>
    %2 = arith.addf %0, %1 : vector<8x128xf32>
    %c0_1 = arith.constant 0 : index
    %c0_2 = arith.constant 0 : index
    %3 = vector.load %arg2[%c0_1, %c0_2] : memref<8x128xf32, #tpu.memory_space<vmem>>, vector<8x128xf32>
    tpu.vector_store %arg2[%c0_1, %c0_2], %2 {strides = array<i32>} : memref<8x128xf32, #tpu.memory_space<vmem>>, vector<8x128xf32>,
    return
  }
  func.func @transform_0(%arg0: i32) -> (i32, i32) {
    %c0_i32 = arith.constant 0 : i32
    %c0_i32_0 = arith.constant 0 : i32
    %c0_i32_1 = arith.constant 0 : i32
    return %c0_i32, %c0_i32_0 : i32, i32
  }
  func.func @transform_1(%arg0: i32) -> (i32, i32) {
    %c0_i32 = arith.constant 0 : i32
    %c0_i32_0 = arith.constant 0 : i32
    %c0_i32_1 = arith.constant 0 : i32
    return %c0_i32, %c0_i32_0 : i32, i32
  }
}

module attributes {stable_mosaic.version = 11 : i64} {
  func.func @_proj_kernel(%arg0: i32, %arg1: i32, %arg2: memref<16x16xf32, #tpu.memory_space<vmem>>, %arg3: memref<16x128xf32, #tpu.memory_space<vmem>>, %arg4: memref<1x128xf32, #tpu.memory_space<vmem>>, %arg5: memref<16x128xf32, #tpu.memory_space<vmem>>) attributes {dimension_semantics = [#tpu.dimension_semantics<parallel>, #tpu.dimension_semantics<parallel>], iteration_bounds = array<i64: 1, 1>, scalar_prefetch = 0 : i64, scratch_operands = 0 : i64, tpu.core_type = #tpu.core_type<tc>, window_params = [{transform_indices = @transform_0, window_bounds = array<i64: 16, 16>}, {transform_indices = @transform_1, window_bounds = array<i64: 16, 128>}, {transform_indices = @transform_2, window_bounds = array<i64: 1, 128>}, {transform_indices = @transform_3, window_bounds = array<i64: 16, 128>}]} {
    %c0 = arith.constant 0 : index
    %c0_0 = arith.constant 0 : index
    %0 = vector.load %arg2[%c0, %c0_0] : memref<16x16xf32, #tpu.memory_space<vmem>>, vector<16x16xf32>
    %c0_1 = arith.constant 0 : index
    %c0_2 = arith.constant 0 : index
    %1 = vector.load %arg3[%c0_1, %c0_2] : memref<16x128xf32, #tpu.memory_space<vmem>>, vector<16x128xf32>
    %cst = arith.constant dense<0.000000e+00> : vector<16x128xf32>
    %2 = tpu.matmul %0, %1, %cst {dimension_numbers = #tpu.dot_dimension_numbers<[1], [0], [0], [1], [0, 0, 1, 1], [], []>} : vector<16x16xf32>, vector<16x128xf32>, vector<16x128xf32> -> vector<16x128xf32>
    %c0_3 = arith.constant 0 : index
    %c0_4 = arith.constant 0 : index
    %3 = vector.load %arg4[%c0_3, %c0_4] : memref<1x128xf32, #tpu.memory_space<vmem>>, vector<1x128xf32>
    %4 = vector.broadcast %3 : vector<1x128xf32> to vector<16x128xf32>
    %5 = arith.addf %2, %4 : vector<16x128xf32>
    %c0_5 = arith.constant 0 : index
    %c0_6 = arith.constant 0 : index
    %6 = vector.load %arg5[%c0_5, %c0_6] : memref<16x128xf32, #tpu.memory_space<vmem>>, vector<16x128xf32>
    tpu.vector_store %arg5[%c0_5, %c0_6], %5 {strides = array<i32>} : memref<16x128xf32, #tpu.memory_space<vmem>>, vector<16x128xf32>,
    return
  }
  func.func @transform_0(%arg0: i32, %arg1: i32) -> (i32, i32) {
    %c0_i32 = arith.constant 0 : i32
    %c0_i32_0 = arith.constant 0 : i32
    return %arg0, %c0_i32 : i32, i32
  }
  func.func @transform_1(%arg0: i32, %arg1: i32) -> (i32, i32) {
    %c0_i32 = arith.constant 0 : i32
    %c0_i32_0 = arith.constant 0 : i32
    return %c0_i32, %arg1 : i32, i32
  }
  func.func @transform_2(%arg0: i32, %arg1: i32) -> (i32, i32) {
    %c0_i32 = arith.constant 0 : i32
    %c0_i32_0 = arith.constant 0 : i32
    return %c0_i32, %arg1 : i32, i32
  }
  func.func @transform_3(%arg0: i32, %arg1: i32) -> (i32, i32) {
    %c0_i32 = arith.constant 0 : i32
    return %arg0, %arg1 : i32, i32
  }
}

</mosaic_0001>

<llo_original>
// kernel: tpu_custom_call.1
$region0: #{tpu_custom_call.1}
  #allocation0 [shape = 'u32[]', space=smem, size = 0x4, offset = 0x4, fixed_abs, tag = 'smem constant byte address 0x4 - core index']
  #allocation1 [shape = 'u32[144,128]{1,0:T(1,128)}', space=vmem, size = 0x12000, scoped, tag = 'internal scratch']
  %s0 = inlined_call_operand.hbm [shape: f32[8,128], index: 0, kind: input, shape index: {}]
  %s1 = inlined_call_operand.hbm [shape: f32[8,128], index: 1, kind: output, shape index: {}]
  %s2 = sld [smem:[#allocation0]]
  $region41: #{tpu_custom_call.1} parent=0
    _
  %s4 = ssub.s32 1, %s2
  %s5 = scalar_select 0, %s4, %s2
  $region1: #{tpu_custom_call.1} parent=0
    #allocation2 [shape = 'u8[4096]{0}', space=vmem, size = 0x1000, scoped, tag = 'input window, operand 0, single buffered']
    #allocation3 [shape = 's32[2]{0}', space=sflag, size = 0x8, scoped, tag = 'scoped memory for tpu_custom_call.1']
    #allocation4 [shape = 's32[2]{0}', space=sflag, size = 0x8, scoped, tag = 'scoped memory for tpu_custom_call.1']
    #allocation5 [shape = 'u8[4096]{0}', space=vmem, size = 0x1000, scoped, tag = 'output window, operand 0, single buffered']
    %6 = vsyncpa [#allocation3], 0
    %7 = vsyncpa [#allocation4], 0
    loop: start=0, step=1, limit=4
    $region2: #{tpu_custom_call.1} parent=1 // loop_pre_header
      _
    $region3: #{tpu_custom_call.1} parent=1 // loop_header
      %s9 = sphi 0, %s13
      %p10 = scmp.ge.s32.totalorder %s9, 4
      %s17 = sphi 0, %s17
      %s19 = sphi 0, %s17
      %s20 = sphi 0, %s19
      %s34 = sphi 0, %s20
      %s38 = sphi 0, %s38
      %s40 = sphi 0, %s38
      %s41 = sphi 0, %s40
      %s55 = sphi 0, %s41
    $region4: #{tpu_custom_call.1} parent=1 // loop_header_branch
      %12 = sbr.rel (%p10) target = $region8
    $region5: #{tpu_custom_call.1} parent=1 // loop_body
      %s14 = ssub.s32 %s9, 1
      %s15 = ssub.s32 %s9, 2
      %s16 = sadd.s32 %s9, 1
      %s18 = sadd.s32 %s17, 1
      %p21 = scmp.eq.s32.totalorder %s9, 1
      %p22 = scmp.ne.s32.totalorder %s17, %s19
      %p23 = scmp.eq.s32.totalorder %s9, 0
      %p24 = por %p22, %p23
      %p25 = scmp.ne.s32.totalorder %s17, %s19
      %p26 = scmp.eq.s32.totalorder %s14, 1
      %p27 = por %p25, %p26
      %p28 = scmp.ne.s32.totalorder %s19, %s20
      %p29 = scmp.eq.s32.totalorder %s14, 0
      %p30 = por %p28, %p29
      %p31 = scmp.ne.s32.totalorder %s19, %s20
      %p32 = scmp.eq.s32.totalorder %s15, 1
      %p33 = por %p31, %p32
      %p35 = scmp.ne.s32.totalorder %s20, %s34
      %p36 = scmp.eq.s32.totalorder %s15, 0
      %p37 = por %p35, %p36
      %s39 = sadd.s32 %s38, 1
      %p42 = scmp.eq.s32.totalorder %s9, 1
      %p43 = scmp.ne.s32.totalorder %s38, %s40
      %p44 = scmp.eq.s32.totalorder %s9, 0
      %p45 = por %p43, %p44
      %p46 = scmp.ne.s32.totalorder %s38, %s40
      %p47 = scmp.eq.s32.totalorder %s14, 1
      %p48 = por %p46, %p47
      %p49 = scmp.ne.s32.totalorder %s40, %s41
      %p50 = scmp.eq.s32.totalorder %s14, 0
      %p51 = por %p49, %p50
      %p52 = scmp.ne.s32.totalorder %s40, %s41
      %p53 = scmp.eq.s32.totalorder %s15, 1
      %p54 = por %p52, %p53
      %p56 = scmp.ne.s32.totalorder %s41, %s55
      %p57 = scmp.eq.s32.totalorder %s15, 0
      %p58 = por %p56, %p57
      %p59 = scmp.le.s32.totalorder 1, %s9
      %p60 = scmp.lt.s32.totalorder %s9, 3
      %p61 = pnand %p59, %p60
      %p62 = pneg %p61
      // Predicated region
      $region9: #{tpu_custom_call.1} parent=5 // pred_check
        _
      $region10: #{tpu_custom_call.1} parent=5 // pred_check_branch
        %64 = sbr.rel (%p61) target = $region12
      $region11: #{tpu_custom_call.1} parent=5 // pred_region
        %s65 = ssub.s32 %s9, 1
        // Predicated region
        $region13: #{tpu_custom_call.1} parent=11 // pred_check
          %p66 = pneg %p30
        $region14: #{tpu_custom_call.1} parent=11 // pred_check_branch
          %68 = sbr.rel (%p66) target = $region16
        $region15: #{tpu_custom_call.1} parent=11 // pred_region
          %s70 = ssub.s32 128, 128
          %71 = vsyncadd [#allocation3], %s70
          %s73 = sshll.u32 [#allocation2], 4
          %s74 = int_to_ptr.vmem [resolvable:$true] %s73
          %76 = dma.hbm_to_vmem [thread:$0]  %s0, 128, %s74, [#allocation3]
        $region16: #{tpu_custom_call.1} parent=11 // pred_fallthru
          _
      $region12: #{tpu_custom_call.1} parent=5 // pred_fallthru
        _
      %p77 = scmp.lt.s32.totalorder %s9, 2
      // Predicated region
      $region17: #{tpu_custom_call.1} parent=5 // pred_check
        %p78 = pneg %p77
      $region18: #{tpu_custom_call.1} parent=5 // pred_check_branch
        %80 = sbr.rel (%p78) target = $region20
      $region19: #{tpu_custom_call.1} parent=5 // pred_region
        _
      $region20: #{tpu_custom_call.1} parent=5 // pred_fallthru
        _
      %p81 = scmp.le.s32.totalorder 1, %s9
      %p82 = scmp.lt.s32.totalorder %s9, 3
      %p83 = pnand %p81, %p82
      %p84 = pneg %p83
      // Predicated region
      $region21: #{tpu_custom_call.1} parent=5 // pred_check
        _
      $region22: #{tpu_custom_call.1} parent=5 // pred_check_branch
        %86 = sbr.rel (%p83) target = $region24
      $region23: #{tpu_custom_call.1} parent=5 // pred_region
        %s87 = ssub.s32 %s9, 1
        // Predicated region
        $region25: #{tpu_custom_call.1} parent=23 // pred_check
          %p88 = pneg %p30
        $region26: #{tpu_custom_call.1} parent=23 // pred_check_branch
          %90 = sbr.rel (%p88) target = $region28
        $region27: #{tpu_custom_call.1} parent=23 // pred_region
          %91 = dma.done [#allocation3], 128
        $region28: #{tpu_custom_call.1} parent=23 // pred_fallthru
          _
        %p92 = pneg %p30
        %p93 = pneg %p27
        %p94 = pneg %p51
        %p95 = pneg %p48
        %v96 = vld [vmem:[#allocation2] sm:$0xff]
        %v97 = vadd.f32 %v96, 1.0
        %98 = vst [vmem:[#allocation5] sm:$0xff] %v97
        // Predicated region
        $region29: #{tpu_custom_call.1} parent=23 // pred_check
          %p99 = pneg %p48
        $region30: #{tpu_custom_call.1} parent=23 // pred_check_branch
          %101 = sbr.rel (%p99) target = $region32
        $region31: #{tpu_custom_call.1} parent=23 // pred_region
          %s103 = ssub.s32 128, 128
          %104 = vsyncadd [#allocation4], %s103
          %s106 = sshll.u32 [#allocation5], 4
          %s107 = int_to_ptr.vmem [resolvable:$true] %s106
          %109 = dma.vmem_to_hbm [thread:$0]  %s107, 128, %s1, [#allocation4]
        $region32: #{tpu_custom_call.1} parent=23 // pred_fallthru
          _
        // Predicated region
        $region33: #{tpu_custom_call.1} parent=23 // pred_check
          %p110 = pneg %p48
        $region34: #{tpu_custom_call.1} parent=23 // pred_check_branch
          %112 = sbr.rel (%p110) target = $region36
        $region35: #{tpu_custom_call.1} parent=23 // pred_region
          %113 = dma.done [#allocation4], 128
        $region36: #{tpu_custom_call.1} parent=23 // pred_fallthru
          _
      $region24: #{tpu_custom_call.1} parent=5 // pred_fallthru
        _
      %p114 = scmp.le.s32.totalorder 2, %s9
      // Predicated region
      $region37: #{tpu_custom_call.1} parent=5 // pred_check
        %p115 = pneg %p114
      $region38: #{tpu_custom_call.1} parent=5 // pred_check_branch
        %117 = sbr.rel (%p115) target = $region40
      $region39: #{tpu_custom_call.1} parent=5 // pred_region
        %s118 = ssub.s32 %s9, 2
      $region40: #{tpu_custom_call.1} parent=5 // pred_fallthru
        _
    $region6: #{tpu_custom_call.1} parent=1 // loop_footer
      %s13 = sadd.s32 1, %s9
    $region7: #{tpu_custom_call.1} parent=1 // loop_footer_branch
      %8 = sbr.rel target = $region3
    $region8: #{tpu_custom_call.1} parent=1 // loop_exit
      _
    %119 = vsyncpa [#allocation3], 1
    %s120 = scalar_lea.sflag [#allocation3], 1
    %121 = vsyncpa %s120, 1
    %122 = vsyncpa [#allocation4], 1
    %s123 = scalar_lea.sflag [#allocation4], 1
    %124 = vsyncpa %s123, 1

// kernel: tpu_custom_call.1
$region0: #{tpu_custom_call.1}
  #allocation0 [shape = 'u32[]', space=smem, size = 0x4, offset = 0x4, fixed_abs, tag = 'smem constant byte address 0x4 - core index']
  #allocation1 [shape = 'u32[144,128]{1,0:T(1,128)}', space=vmem, size = 0x12000, scoped, tag = 'internal scratch']
  %s0 = inlined_call_operand.hbm [shape: f32[16,16], index: 0, kind: input, shape index: {}]
  %s1 = inlined_call_operand.hbm [shape: f32[16,128], index: 1, kind: input, shape index: {}]
  %s2 = inlined_call_operand.vmem [shape: f32[1,128], index: 2, kind: input, shape index: {}]
  %s3 = inlined_call_operand.hbm [shape: f32[16,128], index: 3, kind: output, shape index: {}]
  %s4 = sld [smem:[#allocation0]]
  $region30: #{tpu_custom_call.1} parent=0
    _
  %s6 = ssub.s32 1, %s4
  %s7 = scalar_select 0, %s6, %s4
  $region1: #{tpu_custom_call.1} parent=0
    #allocation2 [shape = 'u8[8192]{0}', space=vmem, size = 0x2000, scoped, tag = 'input window, operand 0, single buffered']
    #allocation3 [shape = 's32[1]{0}', space=sflag, size = 0x4, scoped, tag = 'scoped memory for tpu_custom_call.1']
    #allocation4 [shape = 's32[1]{0}', space=sflag, size = 0x4, scoped, tag = 'scoped memory for tpu_custom_call.1']
    #allocation5 [shape = 'u8[8192]{0}', space=vmem, size = 0x2000, scoped, tag = 'input window, operand 1, single buffered']
    #allocation6 [shape = 's32[1]{0}', space=sflag, size = 0x4, scoped, tag = 'scoped memory for tpu_custom_call.1']
    #allocation7 [shape = 'u8[8192]{0}', space=vmem, size = 0x2000, scoped, tag = 'output window, operand 0, single buffered']
    %8 = vsyncpa [#allocation3], 0
    %9 = vsyncpa [#allocation6], 0
    %10 = vsyncpa [#allocation4], 0
    // Predicated region
    $region2: #{tpu_custom_call.1} parent=1 // pred_check
      _
    $region3: #{tpu_custom_call.1} parent=1 // pred_check_branch
      %12 = sbr.rel (0) target = $region5
    $region4: #{tpu_custom_call.1} parent=1 // pred_region
      %s14 = ssub.s32 256, 256
      %15 = vsyncadd [#allocation3], %s14
      %s16 = sshll.u32 [#allocation2], 4
      %s17 = int_to_ptr.vmem [resolvable:$true] %s16
      %22 = dma.hbm_to_vmem [thread:$0]  %s0, 256, %s17, [#allocation3], 128, 128, 8
    $region5: #{tpu_custom_call.1} parent=1 // pred_fallthru
      _
    // Predicated region
    $region6: #{tpu_custom_call.1} parent=1 // pred_check
      _
    $region7: #{tpu_custom_call.1} parent=1 // pred_check_branch
      %24 = sbr.rel (0) target = $region9
    $region8: #{tpu_custom_call.1} parent=1 // pred_region
      %s26 = ssub.s32 256, 256
      %27 = vsyncadd [#allocation6], %s26
      %s28 = sshll.u32 [#allocation5], 4
      %s29 = int_to_ptr.vmem [resolvable:$true] %s28
      %34 = dma.hbm_to_vmem [thread:$0]  %s1, 256, %s29, [#allocation6], 128, 128, 8
    $region9: #{tpu_custom_call.1} parent=1 // pred_fallthru
      _
    // Predicated region
    $region10: #{tpu_custom_call.1} parent=1 // pred_check
      _
    $region11: #{tpu_custom_call.1} parent=1 // pred_check_branch
      %36 = sbr.rel (0) target = $region13
    $region12: #{tpu_custom_call.1} parent=1 // pred_region
      _
    $region13: #{tpu_custom_call.1} parent=1 // pred_fallthru
      _
    // Predicated region
    $region14: #{tpu_custom_call.1} parent=1 // pred_check
      _
    $region15: #{tpu_custom_call.1} parent=1 // pred_check_branch
      %38 = sbr.rel (0) target = $region17
    $region16: #{tpu_custom_call.1} parent=1 // pred_region
      %39 = dma.done [#allocation3], 256
    $region17: #{tpu_custom_call.1} parent=1 // pred_fallthru
      _
    // Predicated region
    $region18: #{tpu_custom_call.1} parent=1 // pred_check
      _
    $region19: #{tpu_custom_call.1} parent=1 // pred_check_branch
      %41 = sbr.rel (0) target = $region21
    $region20: #{tpu_custom_call.1} parent=1 // pred_region
      %42 = dma.done [#allocation6], 256
    $region21: #{tpu_custom_call.1} parent=1 // pred_fallthru
      _
    %v43 = vld [vmem:[#allocation2] sm:$0xff]
    %v44 = vld [vmem:[#allocation2 + $0x8] sm:$0xff]
    %v45 = vld [vmem:[#allocation5] sm:$0xff]
    %v46 = vld [vmem:[#allocation5 + $0x8] sm:$0xff]
    %v47 = vld [vmem:[%s2] sm:$0x1]
    %v49 = vlaneseq
    %v50 = vshrl.u32 %v49, 7
    %v51 = vsub.s32 0, %v50
    %v52 = vrot.slane %v47, %v51
    %vm54 = vcmask 130048
    %v56 = vsel %vm54, %v43, 0
    %v59 = vsel %vm54, %v44, 0
    %61 = vmatprep.subr.mxu0 0.0
    %62 = vmatpush1.msra.mxu0 %v45
    %63 = vmatprep.subr.mxu0 0.0
    %64 = vmatpush1.msra.mxu0 %v46
    %65 = vmatprep.subr.mxu0 0.0
    %66 = vmatpush1.msra.mxu0 0.0
    %67 = vmatprep.subr.mxu0 0.0
    %68 = vmatpush1.msra.mxu0 0.0
    %69 = vmatprep.subr.mxu0 0.0
    %70 = vmatpush1.msra.mxu0 0.0
    %71 = vmatprep.subr.mxu0 0.0
    %72 = vmatpush1.msra.mxu0 0.0
    %73 = vmatprep.subr.mxu0 0.0
    %74 = vmatpush1.msra.mxu0 0.0
    %75 = vmatprep.subr.mxu0 0.0
    %76 = vmatpush1.msra.mxu0 0.0
    %77 = vmatprep.subr.mxu0 0.0
    %78 = vmatpush1.msra.mxu0 0.0
    %79 = vmatprep.subr.mxu0 0.0
    %80 = vmatpush1.msra.mxu0 0.0
    %81 = vmatprep.subr.mxu0 0.0
    %82 = vmatpush1.msra.mxu0 0.0
    %83 = vmatprep.subr.mxu0 0.0
    %84 = vmatpush1.msra.mxu0 0.0
    %85 = vmatprep.subr.mxu0 0.0
    %86 = vmatpush1.msra.mxu0 0.0
    %87 = vmatprep.subr.mxu0 0.0
    %88 = vmatpush1.msra.mxu0 0.0
    %89 = vmatprep.subr.mxu0 0.0
    %90 = vmatpush1.msra.mxu0 0.0
    %91 = vmatprep.subr.mxu0 0.0
    %92 = vmatpush1.msra.mxu0 0.0
    %93 = vmatprep.subr.mxu0 0.0
    %94 = vmatpush1.msra.mxu0 0.0
    %95 = vmatprep.subr.mxu0 0.0
    %96 = vmatpush1.msra.mxu0 0.0
    %97 = vmatprep.subr.mxu0 0.0
    %98 = vmatpush1.msra.mxu0 0.0
    %99 = vmatprep.subr.mxu0 0.0
    %100 = vmatpush1.msra.mxu0 0.0
    %101 = vmatprep.subr.mxu0 0.0
    %102 = vmatpush1.msra.mxu0 0.0
    %103 = vmatprep.subr.mxu0 0.0
    %104 = vmatpush1.msra.mxu0 0.0
    %105 = vmatprep.subr.mxu0 0.0
    %106 = vmatpush1.msra.mxu0 0.0
    %107 = vmatprep.subr.mxu0 0.0
    %108 = vmatpush1.msra.mxu0 0.0
    %109 = vmatprep.subr.mxu0 0.0
    %110 = vmatpush1.msra.mxu0 0.0
    %111 = vmatprep.subr.mxu0 0.0
    %112 = vmatpush1.msra.mxu0 0.0
    %113 = vmatprep.subr.mxu0 0.0
    %114 = vmatpush1.msra.mxu0 0.0
    %115 = vmatprep.subr.mxu0 0.0
    %116 = vmatpush1.msra.mxu0 0.0
    %117 = vmatprep.subr.mxu0 0.0
    %118 = vmatpush1.msra.mxu0 0.0
    %119 = vmatprep.subr.mxu0 0.0
    %120 = vmatpush1.msra.mxu0 0.0
    %121 = vmatprep.subr.mxu0 0.0
    %122 = vmatpush1.msra.mxu0 0.0
    %123 = vmatprep.subr.mxu0 0.0
    %124 = vmatpush1.msra.mxu0 0.0
    %125 = vmatprep.mubr.f32.mxu0 0.0
    %126 = vmatmul.mubr.f32.gmra.mrb[0].mxu0 %v56
    %v127 = vpop.f32.mrb[0].mxu0
    %v128 = vadd.f32 %v52, %v127
    %v129 = vpop.f32.mrb[0].mxu0
    %130 = vmatprep.mubr.f32.mxu0 0.0
    %131 = vmatmul.mubr.f32.gmra.mrb[0].mxu0 %v59
    %v132 = vpop.f32.mrb[0].mxu0
    %v133 = vadd.f32 %v52, %v132
    %v134 = vpop.f32.mrb[0].mxu0
    %135 = vdwg.mxu0
    %136 = vst [vmem:[#allocation7] sm:$0xff] %v128
    %137 = vst [vmem:[#allocation7 + $0x8] sm:$0xff] %v133
    // Predicated region
    $region22: #{tpu_custom_call.1} parent=1 // pred_check
      _
    $region23: #{tpu_custom_call.1} parent=1 // pred_check_branch
      %139 = sbr.rel (0) target = $region25
    $region24: #{tpu_custom_call.1} parent=1 // pred_region
      %s141 = ssub.s32 256, 256
      %142 = vsyncadd [#allocation4], %s141
      %s143 = sshll.u32 [#allocation7], 4
      %s144 = int_to_ptr.vmem [resolvable:$true] %s143
      %149 = dma.vmem_to_hbm [thread:$0]  %s144, 256, %s3, [#allocation4], 128, 128, 8
    $region25: #{tpu_custom_call.1} parent=1 // pred_fallthru
      _
    // Predicated region
    $region26: #{tpu_custom_call.1} parent=1 // pred_check
      _
    $region27: #{tpu_custom_call.1} parent=1 // pred_check_branch
      %151 = sbr.rel (0) target = $region29
    $region28: #{tpu_custom_call.1} parent=1 // pred_region
      %152 = dma.done [#allocation4], 256
    $region29: #{tpu_custom_call.1} parent=1 // pred_fallthru
      _
    %153 = vsyncpa [#allocation3], 1
    %154 = vsyncpa [#allocation6], 1
    %155 = vsyncpa [#allocation4], 1

</llo_original>
